<compile_context>
chip_gen: v5e
topology: v5e:2x2
jax: 0.10.0
libtpu: 0.0.40
codegen_flags: <defaults>
</compile_context>

<pallas_src>
import functools

import jax
import jax.numpy as jnp
from jax.experimental import pallas as pl
from jax.experimental.pallas import tpu as pltpu


COMPUTE_DTYPE = jnp.bfloat16  # MXU input dtype; accumulation stays f32.


def _round_up(n: int, m: int) -> int:
    return ((n + m - 1) // m) * m


def word2vec_kernel(x_ref, w_ref, wt_ref, out_ref, acc_ref, hid_ref, *,
                    num_k, tk, valid_v, mask_k_edge):
    t = pl.program_id(1)

    @pl.when(t == 0)
    def _init():
        acc_ref[...] = jnp.zeros_like(acc_ref)

    # Phase 1: accumulate the hidden layer over input-vocab tiles.
    @pl.when(t < num_k)
    def _hidden():
        xblk = x_ref[...].astype(w_ref.dtype)  # in-kernel cast (X arrives native)
        if mask_k_edge:
            # Last K tile may read past the real V edge (unspecified values);
            # zero them so garbage (possibly NaN) never enters the accumulator.
            col = t * tk + jax.lax.broadcasted_iota(jnp.int32, xblk.shape, 1)
            xblk = jnp.where(col < valid_v, xblk, jnp.zeros_like(xblk))
        acc_ref[...] += jnp.dot(
            xblk, w_ref[...], preferred_element_type=jnp.float32
        )

    # Hoisted cast: stage the finished hidden layer to bf16 once, not per out tile.
    @pl.when(t == num_k - 1)
    def _stage_hidden():
        hid_ref[...] = acc_ref[...].astype(hid_ref.dtype)

    # Phase 2: emit one output-vocab tile per step.
    @pl.when(t >= num_k)
    def _output():
        out_ref[...] = jnp.dot(
            hid_ref[...], wt_ref[...], preferred_element_type=jnp.float32
        ).astype(out_ref.dtype)


def prepare_word2vec_params(w_weight, wt_weight, *, vocab_tile=512,
                            compute_dtype=COMPUTE_DTYPE):
    """Call once at init: transpose to matmul layout, pad to tile, cast to bf16.

    w_weight : (E, V) torch nn.Linear layout   -> W_t  (Vp, Ep)
    wt_weight: (V, E) torch nn.Linear layout   -> WT_t (Ep, Vp)

    Vocab is padded UP to a multiple of `vocab_tile` (not the other way round), so
    grids stay short even when the 128-aligned vocab has a prime-ish factorization.
    """
    w_weight = jnp.asarray(w_weight)
    wt_weight = jnp.asarray(wt_weight)
    E, V = w_weight.shape
    assert wt_weight.shape == (V, E)

    vt = min(_round_up(vocab_tile, 128), _round_up(V, 128))
    Vp = _round_up(V, vt)
    Ep = _round_up(E, 128)

    w_t = jnp.pad(w_weight.T.astype(compute_dtype), ((0, Vp - V), (0, Ep - E)))
    wt_t = jnp.pad(wt_weight.T.astype(compute_dtype), ((0, Ep - E), (0, Vp - V)))
    return dict(w_t=w_t, wt_t=wt_t, V=V, E=E, vocab_tile=vt)


def word2vec_forward(x, params, *, tb=1024, out_dtype=jnp.bfloat16,
                     vmem_budget_bytes=48 * 1024 * 1024):
    """x: (B, V) dense input in its native dtype; params from prepare_word2vec_params."""
    w_t, wt_t = params["w_t"], params["wt_t"]
    V, E, VT = params["V"], params["E"], params["vocab_tile"]
    Vp, Ep = w_t.shape
    assert wt_t.shape == (Ep, Vp)
    B, Vx = x.shape
    assert Vx == V

    TK = TN = VT
    num_k = Vp // TK
    num_j = Vp // TN

    # Prefer a single batch tile (weights streamed from HBM exactly once); only
    # shrink when the double-buffered footprint exceeds the v7x-safe VMEM budget.
    tb = max(8, (tb // 8) * 8)
    TB = min(_round_up(B, 8), tb)

    x_isize = x.dtype.itemsize
    w_isize = w_t.dtype.itemsize
    out_isize = jnp.dtype(out_dtype).itemsize

    def footprint(tb_):
        return (2 * tb_ * TK * x_isize        # X double buffer
                + 2 * TK * Ep * w_isize       # W double buffer
                + 2 * Ep * TN * w_isize       # WT double buffer
                + 2 * tb_ * TN * out_isize    # out double buffer
                + tb_ * Ep * 4                # f32 hidden accumulator
                + tb_ * Ep * 2)               # bf16 staged hidden

    while footprint(TB) > vmem_budget_bytes and TB > 8:
        TB = max(8, _round_up(max(TB // 2, 8), 8))

    num_b = pl.cdiv(B, TB)

    kernel = functools.partial(
        word2vec_kernel,
        num_k=num_k, tk=TK, valid_v=V, mask_k_edge=(V != Vp),
    )

    # Clamped index maps: operands unused in the current phase keep the same block
    # index -> stay VMEM-resident, no redundant DMA, no recompute of phase 1.
    x_map = lambda b, t: (b, jnp.minimum(t, num_k - 1))
    w_map = lambda b, t: (jnp.minimum(t, num_k - 1), 0)
    wt_map = lambda b, t: (0, jnp.maximum(t - num_k, 0))
    o_map = lambda b, t: (b, jnp.maximum(t - num_k, 0))

    flops = 4 * (num_b * TB) * Vp * Ep  # two (TB,Vp)x(Vp,Ep)-class matmuls
    bytes_accessed = int(
        B * V * x_isize
        + num_b * (w_t.size * w_isize + wt_t.size * w_isize)  # weights re-streamed per batch tile
        + B * V * out_isize
    )
    vmem_limit = int(max(32 * 1024 * 1024, footprint(TB) + 8 * 1024 * 1024))

    out = pl.pallas_call(
        kernel,
        out_shape=jax.ShapeDtypeStruct((B, V), out_dtype),
        grid_spec=pltpu.PrefetchScalarGridSpec(
            num_scalar_prefetch=0,
            grid=(num_b, num_k + num_j),
            in_specs=[
                pl.BlockSpec((TB, TK), x_map),    # X (native dtype, cast in kernel)
                pl.BlockSpec((TK, Ep), w_map),    # W  (pre-transposed, padded, bf16)
                pl.BlockSpec((Ep, TN), wt_map),   # WT (pre-transposed, padded, bf16)
            ],
            out_specs=pl.BlockSpec((TB, TN), o_map),
            scratch_shapes=[
                pltpu.VMEM((TB, Ep), jnp.float32),   # hidden accumulator
                pltpu.VMEM((TB, Ep), w_t.dtype),     # staged bf16 hidden
            ],
        ),
        compiler_params=pltpu.CompilerParams(
            # Batch axis "parallel" (megacore on v7x); with a single batch tile it
            # is harmless and avoids re-streaming weights on single-TC v5e/v6e.
            dimension_semantics=("parallel", "arbitrary"),
            vmem_limit_bytes=vmem_limit,
        ),
        cost_estimate=pl.CostEstimate(
            flops=flops, transcendentals=0, bytes_accessed=bytes_accessed
        ),
    )(x, w_t, wt_t)

    return out


if __name__ == "__main__":
    # Case 1: small, module-consistent shapes; f32 output path.
    batch, vocab_size, embedding_size = 8, 16, 32

    key = jax.random.PRNGKey(0)
    kx, kw, kwt = jax.random.split(key, 3)

    x = jax.random.normal(kx, (batch, vocab_size), dtype=jnp.float32)
    # nn.Linear weight layouts: W (E, V), WT (V, E).
    w_weight = jax.random.normal(kw, (embedding_size, vocab_size), jnp.float32) * 0.1
    wt_weight = jax.random.normal(kwt, (vocab_size, embedding_size), jnp.float32) * 0.1

    params = prepare_word2vec_params(w_weight, wt_weight)
    out = jax.block_until_ready(word2vec_forward(x, params, out_dtype=jnp.float32))

    # References: bf16-compute emulation (matches kernel numerics) and exact f32.
    hid = jnp.dot(x.astype(jnp.bfloat16), w_weight.astype(jnp.bfloat16).T,
                  preferred_element_type=jnp.float32)
    ref_bf16 = jnp.dot(hid.astype(jnp.bfloat16), wt_weight.astype(jnp.bfloat16).T,
                       preferred_element_type=jnp.float32)
    ref_f32 = (x @ w_weight.T) @ wt_weight.T

    assert out.shape == (batch, vocab_size)
    assert jnp.allclose(out, ref_bf16, atol=5e-3, rtol=5e-3)
    assert jnp.allclose(out, ref_f32, atol=5e-2, rtol=5e-2)

    # Case 2: non-aligned B/V/E, multiple K and N tiles, masked V edge, default
    # bf16 output.
    b2, v2, e2 = 20, 1000, 300
    k2 = jax.random.PRNGKey(2)
    kx2, kw2, kwt2 = jax.random.split(k2, 3)
    x2 = jax.random.normal(kx2, (b2, v2), jnp.float32)
    w2 = jax.random.normal(kw2, (e2, v2), jnp.float32) * 0.05
    wt2 = jax.random.normal(kwt2, (v2, e2), jnp.float32) * 0.05

    params2 = prepare_word2vec_params(w2, wt2)
    out2 = jax.block_until_ready(word2vec_forward(x2, params2))
    assert out2.shape == (b2, v2) and out2.dtype == jnp.bfloat16

    hid2 = jnp.dot(x2.astype(jnp.bfloat16), w2.astype(jnp.bfloat16).T,
                   preferred_element_type=jnp.float32)
    ref2 = jnp.dot(hid2.astype(jnp.bfloat16), wt2.astype(jnp.bfloat16).T,
                   preferred_element_type=jnp.float32)
    assert jnp.allclose(out2.astype(jnp.float32), ref2, atol=5e-2, rtol=5e-2)

    # Case 3: force multiple batch tiles (tb=8) to exercise the batch-edge mask
    # and the clamped index maps across batch tiles.
    out3 = jax.block_until_ready(
        word2vec_forward(x2, params2, tb=8, out_dtype=jnp.float32))
    assert out3.shape == (b2, v2)
    assert jnp.allclose(out3, ref2, atol=5e-2, rtol=5e-2)

    print("KERNEL_OK")
</pallas_src>

<mosaic_0001>
module attributes {stable_mosaic.version = 11 : i64} {
  func.func @word2vec_kernel(%arg0: i32, %arg1: i32, %arg2: memref<8x128xf32, #tpu.memory_space<vmem>>, %arg3: memref<128x128xbf16, #tpu.memory_space<vmem>>, %arg4: memref<128x128xbf16, #tpu.memory_space<vmem>>, %arg5: memref<8x128xf32, #tpu.memory_space<vmem>>, %arg6: memref<8x128xf32, #tpu.memory_space<vmem>>, %arg7: memref<8x128xbf16, #tpu.memory_space<vmem>>) attributes {dimension_semantics = [#tpu.dimension_semantics<parallel>, #tpu.dimension_semantics<arbitrary>], iteration_bounds = array<i64: 1, 2>, scalar_prefetch = 0 : i64, scratch_operands = 2 : i64, tpu.core_type = #tpu.core_type<tc>, window_params = [{transform_indices = @transform_0, window_bounds = array<i64: 8, 128>}, {transform_indices = @transform_1, window_bounds = array<i64: 128, 128>}, {transform_indices = @transform_2, window_bounds = array<i64: 128, 128>}, {transform_indices = @transform_3, window_bounds = array<i64: 8, 128>}]} {
    %c0_i32 = arith.constant 0 : i32
    %0 = arith.cmpi eq, %arg1, %c0_i32 : i32
    %1 = arith.extui %0 : i1 to i32
    %c0_i32_0 = arith.constant 0 : i32
    %2 = arith.cmpi ne, %1, %c0_i32_0 : i32
    scf.if %2 {
      %cst = arith.constant 0.000000e+00 : f32
      %12 = vector.broadcast %cst : f32 to vector<8x128xf32>
      %c0 = arith.constant 0 : index
      %c0_6 = arith.constant 0 : index
      %13 = vector.load %arg6[%c0, %c0_6] : memref<8x128xf32, #tpu.memory_space<vmem>>, vector<8x128xf32>
      tpu.vector_store %arg6[%c0, %c0_6], %12 {strides = array<i32>} : memref<8x128xf32, #tpu.memory_space<vmem>>, vector<8x128xf32>,
    } else {
    }
    %c1_i32 = arith.constant 1 : i32
    %3 = arith.cmpi slt, %arg1, %c1_i32 : i32
    %4 = arith.extui %3 : i1 to i32
    %c0_i32_1 = arith.constant 0 : i32
    %5 = arith.cmpi ne, %4, %c0_i32_1 : i32
    scf.if %5 {
      %c0 = arith.constant 0 : index
      %c0_6 = arith.constant 0 : index
      %12 = vector.load %arg2[%c0, %c0_6] : memref<8x128xf32, #tpu.memory_space<vmem>>, vector<8x128xf32>
      %13 = arith.truncf %12 : vector<8x128xf32> to vector<8x128xbf16>
      %c128_i32 = arith.constant 128 : i32
      %14 = arith.muli %arg1, %c128_i32 : i32
      %15 = tpu.iota {dimensions = array<i32: 1>} : vector<8x128xi32>
      %16 = vector.broadcast %14 : i32 to vector<8x128xi32>
      %17 = arith.addi %16, %15 : vector<8x128xi32>
      %c16_i32 = arith.constant 16 : i32
      %18 = vector.broadcast %c16_i32 : i32 to vector<8x128xi32>
      %19 = arith.cmpi slt, %17, %18 : vector<8x128xi32>
      %cst = arith.constant 0.000000e+00 : bf16
      %20 = vector.broadcast %cst : bf16 to vector<8x128xbf16>
      %21 = arith.select %19, %13, %20 : vector<8x128xi1>, vector<8x128xbf16>
      %c0_7 = arith.constant 0 : index
      %c0_8 = arith.constant 0 : index
      %22 = vector.load %arg6[%c0_7, %c0_8] : memref<8x128xf32, #tpu.memory_space<vmem>>, vector<8x128xf32>
      %c0_9 = arith.constant 0 : index
      %c0_10 = arith.constant 0 : index
      %23 = vector.load %arg3[%c0_9, %c0_10] : memref<128x128xbf16, #tpu.memory_space<vmem>>, vector<128x128xbf16>
      %cst_11 = arith.constant dense<0.000000e+00> : vector<8x128xf32>
      %24 = tpu.matmul %21, %23, %cst_11 {dimension_numbers = #tpu.dot_dimension_numbers<[1], [0], [0], [1], [0, 0, 1, 1], [], []>} : vector<8x128xbf16>, vector<128x128xbf16>, vector<8x128xf32> -> vector<8x128xf32>
      %25 = arith.addf %22, %24 : vector<8x128xf32>
      %c0_12 = arith.constant 0 : index
      %c0_13 = arith.constant 0 : index
      %26 = vector.load %arg6[%c0_12, %c0_13] : memref<8x128xf32, #tpu.memory_space<vmem>>, vector<8x128xf32>
      tpu.vector_store %arg6[%c0_12, %c0_13], %25 {strides = array<i32>} : memref<8x128xf32, #tpu.memory_space<vmem>>, vector<8x128xf32>,
    } else {
    }
    %c0_i32_2 = arith.constant 0 : i32
    %6 = arith.cmpi eq, %arg1, %c0_i32_2 : i32
    %7 = arith.extui %6 : i1 to i32
    %c0_i32_3 = arith.constant 0 : i32
    %8 = arith.cmpi ne, %7, %c0_i32_3 : i32
    scf.if %8 {
      %c0 = arith.constant 0 : index
      %c0_6 = arith.constant 0 : index
      %12 = vector.load %arg6[%c0, %c0_6] : memref<8x128xf32, #tpu.memory_space<vmem>>, vector<8x128xf32>
      %13 = arith.truncf %12 : vector<8x128xf32> to vector<8x128xbf16>
      %c0_7 = arith.constant 0 : index
      %c0_8 = arith.constant 0 : index
      %14 = vector.load %arg7[%c0_7, %c0_8] : memref<8x128xbf16, #tpu.memory_space<vmem>>, vector<8x128xbf16>
      tpu.vector_store %arg7[%c0_7, %c0_8], %13 {strides = array<i32>} : memref<8x128xbf16, #tpu.memory_space<vmem>>, vector<8x128xbf16>,
    } else {
    }
    %c1_i32_4 = arith.constant 1 : i32
    %9 = arith.cmpi sge, %arg1, %c1_i32_4 : i32
    %10 = arith.extui %9 : i1 to i32
    %c0_i32_5 = arith.constant 0 : i32
    %11 = arith.cmpi ne, %10, %c0_i32_5 : i32
    scf.if %11 {
      %c0 = arith.constant 0 : index
      %c0_6 = arith.constant 0 : index
      %12 = vector.load %arg7[%c0, %c0_6] : memref<8x128xbf16, #tpu.memory_space<vmem>>, vector<8x128xbf16>
      %c0_7 = arith.constant 0 : index
      %c0_8 = arith.constant 0 : index
      %13 = vector.load %arg4[%c0_7, %c0_8] : memref<128x128xbf16, #tpu.memory_space<vmem>>, vector<128x128xbf16>
      %cst = arith.constant dense<0.000000e+00> : vector<8x128xf32>
      %14 = tpu.matmul %12, %13, %cst {dimension_numbers = #tpu.dot_dimension_numbers<[1], [0], [0], [1], [0, 0, 1, 1], [], []>} : vector<8x128xbf16>, vector<128x128xbf16>, vector<8x128xf32> -> vector<8x128xf32>
      %c0_9 = arith.constant 0 : index
      %c0_10 = arith.constant 0 : index
      %15 = vector.load %arg5[%c0_9, %c0_10] : memref<8x128xf32, #tpu.memory_space<vmem>>, vector<8x128xf32>
      tpu.vector_store %arg5[%c0_9, %c0_10], %14 {strides = array<i32>} : memref<8x128xf32, #tpu.memory_space<vmem>>, vector<8x128xf32>,
    } else {
    }
    return
  }
  func.func @transform_0(%arg0: i32, %arg1: i32) -> (i32, i32) {
    %c0_i32 = arith.constant 0 : i32
    %0 = arith.minsi %arg1, %c0_i32 : i32
    %c0_i32_0 = arith.constant 0 : i32
    return %arg0, %0 : i32, i32
  }
  func.func @transform_1(%arg0: i32, %arg1: i32) -> (i32, i32) {
    %c0_i32 = arith.constant 0 : i32
    %0 = arith.minsi %arg1, %c0_i32 : i32
    %c0_i32_0 = arith.constant 0 : i32
    %c0_i32_1 = arith.constant 0 : i32
    return %0, %c0_i32_0 : i32, i32
  }
  func.func @transform_2(%arg0: i32, %arg1: i32) -> (i32, i32) {
    %c1_i32 = arith.constant 1 : i32
    %0 = arith.subi %arg1, %c1_i32 : i32
    %c0_i32 = arith.constant 0 : i32
    %1 = arith.maxsi %0, %c0_i32 : i32
    %c0_i32_0 = arith.constant 0 : i32
    %c0_i32_1 = arith.constant 0 : i32
    return %c0_i32_0, %1 : i32, i32
  }
  func.func @transform_3(%arg0: i32, %arg1: i32) -> (i32, i32) {
    %c1_i32 = arith.constant 1 : i32
    %0 = arith.subi %arg1, %c1_i32 : i32
    %c0_i32 = arith.constant 0 : i32
    %1 = arith.maxsi %0, %c0_i32 : i32
    %c0_i32_0 = arith.constant 0 : i32
    return %arg0, %1 : i32, i32
  }
}

</mosaic_0001>

<llo_original>
// kernel: tpu_custom_call.1
$region0: #{tpu_custom_call.1}
  #allocation0 [shape = 'u32[]', space=smem, size = 0x4, offset = 0x4, fixed_abs, tag = 'smem constant byte address 0x4 - core index']
  #allocation1 [shape = 'u32[72,128]{1,0:T(1,128)}', space=vmem, size = 0x9000, scoped, tag = 'internal scratch']
  #allocation2 [shape = 'f32[8,128]{1,0:T(8,128)}', space=vmem, size = 0x1000, scoped, tag = 'scratch operand']
  #allocation3 [shape = 'bf16[8,128]{1,0:T(8,128)(2,1)}', space=vmem, size = 0x800, scoped, tag = 'scratch operand']
  %s0 = inlined_call_operand.hbm [shape: f32[8,16], index: 0, kind: input, shape index: {}]
  %s1 = inlined_call_operand.hbm [shape: bf16[128,128], index: 1, kind: input, shape index: {}]
  %s2 = inlined_call_operand.hbm [shape: bf16[128,128], index: 2, kind: input, shape index: {}]
  %s3 = inlined_call_operand.hbm [shape: f32[8,16], index: 3, kind: output, shape index: {}]
  %s4 = sld [smem:[#allocation0]]
  $region73: #{tpu_custom_call.1} parent=0
    _
  %s6 = ssub.s32 1, %s4
  %s7 = scalar_select 0, %s6, %s4
  $region1: #{tpu_custom_call.1} parent=0
    #allocation4 [shape = 'u8[8192]{0}', space=vmem, size = 0x2000, scoped, tag = 'input window, operand 0']
    #allocation5 [shape = 's32[2]{0}', space=sflag, size = 0x8, scoped, tag = 'scoped memory for tpu_custom_call.1']
    #allocation6 [shape = 's32[2]{0}', space=sflag, size = 0x8, scoped, tag = 'scoped memory for tpu_custom_call.1']
    #allocation7 [shape = 'u8[65536]{0}', space=vmem, size = 0x10000, scoped, tag = 'input window, operand 1']
    #allocation8 [shape = 's32[2]{0}', space=sflag, size = 0x8, scoped, tag = 'scoped memory for tpu_custom_call.1']
    #allocation9 [shape = 'u8[65536]{0}', space=vmem, size = 0x10000, scoped, tag = 'input window, operand 2']
    #allocation10 [shape = 'u8[8192]{0}', space=vmem, size = 0x2000, scoped, tag = 'output window, operand 0']
    %8 = vsyncpa [#allocation5], 0
    %s9 = scalar_lea.sflag [#allocation5], 1
    %10 = vsyncpa %s9, 0
    %11 = vsyncpa [#allocation8], 0
    %s12 = scalar_lea.sflag [#allocation8], 1
    %13 = vsyncpa %s12, 0
    %14 = vsyncpa [#allocation6], 0
    %s15 = scalar_lea.sflag [#allocation6], 1
    %16 = vsyncpa %s15, 0
    loop: start=0, step=1, limit=4
    $region2: #{tpu_custom_call.1} parent=1 // loop_pre_header
      _
    $region3: #{tpu_custom_call.1} parent=1 // loop_header
      %s18 = sphi 0, %s22
      %p19 = scmp.ge.s32.totalorder %s18, 4
      %s25 = sphi 0, %s37
      %s26 = sphi 0, %s33
      %s27 = sphi 0, %s25
      %s28 = sphi 0, %s26
      %s29 = sphi 0, %s27
      %s30 = sphi 0, %s28
      %s46 = sphi 0, %s48
      %s49 = sphi 0, %s46
      %s50 = sphi 0, %s49
      %s66 = sphi 0, %s50
      %s76 = sphi 0, %s78
      %s79 = sphi 0, %s76
      %s80 = sphi 0, %s79
      %s96 = sphi 0, %s80
      %s108 = sphi 0, %s110
      %s111 = sphi 0, %s108
      %s112 = sphi 0, %s111
      %s128 = sphi 0, %s112
      %s142 = sphi 0, %s144
      %s145 = sphi 0, %s142
      %s146 = sphi 0, %s145
      %s162 = sphi 0, %s146
    $region4: #{tpu_custom_call.1} parent=1 // loop_header_branch
      %21 = sbr.rel (%p19) target = $region8
    $region5: #{tpu_custom_call.1} parent=1 // loop_body
      %s23 = ssub.s32 %s18, 1
      %s24 = ssub.s32 %s18, 2
      %s31 = sadd.s32 1, %s26
      %p32 = scmp.ge.s32.totalorder %s31, 2
      %s33 = scalar_select %p32, 0, %s31
      %s34 = sadd.s32 1, %s25
      %s35 = scalar_select %p32, %s34, %s25
      %p36 = scmp.ge.s32.totalorder %s35, 1
      %s37 = scalar_select %p36, 0, %s35
      %p38 = scmp.lt.s32.totalorder %s26, 0
      %s39 = scalar_select %p38, %s26, 0
      %p40 = scmp.lt.s32.totalorder %s33, 0
      %s41 = scalar_select %p40, %s33, 0
      %s42 = ssub.s32 %s25, %s37
      %s43 = ssub.s32 %s39, %s41
      %s44 = sor.u32 %s42, %s43
      %p45 = scmp.eq.s32.totalorder %s44, 0
      %s47 = sadd.s32 %s46, 1
      %s48 = scalar_select %p45, %s46, %s47
      %p51 = pneg %p45
      %p52 = scmp.eq.s32.totalorder %s18, 1
      %p53 = por %p51, %p52
      %p54 = scmp.ne.s32.totalorder %s46, %s49
      %p55 = scmp.eq.s32.totalorder %s18, 0
      %p56 = por %p54, %p55
      %p57 = scmp.ne.s32.totalorder %s46, %s49
      %p58 = scmp.eq.s32.totalorder %s23, 1
      %p59 = por %p57, %p58
      %p60 = scmp.ne.s32.totalorder %s49, %s50
      %p61 = scmp.eq.s32.totalorder %s23, 0
      %p62 = por %p60, %p61
      %p63 = scmp.ne.s32.totalorder %s49, %s50
      %p64 = scmp.eq.s32.totalorder %s24, 1
      %p65 = por %p63, %p64
      %p67 = scmp.ne.s32.totalorder %s50, %s66
      %p68 = scmp.eq.s32.totalorder %s24, 0
      %p69 = por %p67, %p68
      %p70 = scmp.lt.s32.totalorder %s26, 0
      %s71 = scalar_select %p70, %s26, 0
      %p72 = scmp.lt.s32.totalorder %s33, 0
      %s73 = scalar_select %p72, %s33, 0
      %s74 = ssub.s32 %s71, %s73
      %p75 = scmp.eq.s32.totalorder %s74, 0
      %s77 = sadd.s32 %s76, 1
      %s78 = scalar_select %p75, %s76, %s77
      %p81 = pneg %p75
      %p82 = scmp.eq.s32.totalorder %s18, 1
      %p83 = por %p81, %p82
      %p84 = scmp.ne.s32.totalorder %s76, %s79
      %p85 = scmp.eq.s32.totalorder %s18, 0
      %p86 = por %p84, %p85
      %p87 = scmp.ne.s32.totalorder %s76, %s79
      %p88 = scmp.eq.s32.totalorder %s23, 1
      %p89 = por %p87, %p88
      %p90 = scmp.ne.s32.totalorder %s79, %s80
      %p91 = scmp.eq.s32.totalorder %s23, 0
      %p92 = por %p90, %p91
      %p93 = scmp.ne.s32.totalorder %s79, %s80
      %p94 = scmp.eq.s32.totalorder %s24, 1
      %p95 = por %p93, %p94
      %p97 = scmp.ne.s32.totalorder %s80, %s96
      %p98 = scmp.eq.s32.totalorder %s24, 0
      %p99 = por %p97, %p98
      %s100 = ssub.s32 %s26, 1
      %p101 = scmp.gt.s32.totalorder %s100, 0
      %s102 = scalar_select %p101, %s100, 0
      %s103 = ssub.s32 %s33, 1
      %p104 = scmp.gt.s32.totalorder %s103, 0
      %s105 = scalar_select %p104, %s103, 0
      %s106 = ssub.s32 %s102, %s105
      %p107 = scmp.eq.s32.totalorder %s106, 0
      %s109 = sadd.s32 %s108, 1
      %s110 = scalar_select %p107, %s108, %s109
      %p113 = pneg %p107
      %p114 = scmp.eq.s32.totalorder %s18, 1
      %p115 = por %p113, %p114
      %p116 = scmp.ne.s32.totalorder %s108, %s111
      %p117 = scmp.eq.s32.totalorder %s18, 0
      %p118 = por %p116, %p117
      %p119 = scmp.ne.s32.totalorder %s108, %s111
      %p120 = scmp.eq.s32.totalorder %s23, 1
      %p121 = por %p119, %p120
      %p122 = scmp.ne.s32.totalorder %s111, %s112
      %p123 = scmp.eq.s32.totalorder %s23, 0
      %p124 = por %p122, %p123
      %p125 = scmp.ne.s32.totalorder %s111, %s112
      %p126 = scmp.eq.s32.totalorder %s24, 1
      %p127 = por %p125, %p126
      %p129 = scmp.ne.s32.totalorder %s112, %s128
      %p130 = scmp.eq.s32.totalorder %s24, 0
      %p131 = por %p129, %p130
      %s132 = ssub.s32 %s26, 1
      %p133 = scmp.gt.s32.totalorder %s132, 0
      %s134 = scalar_select %p133, %s132, 0
      %s135 = ssub.s32 %s33, 1
      %p136 = scmp.gt.s32.totalorder %s135, 0
      %s137 = scalar_select %p136, %s135, 0
      %s138 = ssub.s32 %s25, %s37
      %s139 = ssub.s32 %s134, %s137
      %s140 = sor.u32 %s138, %s139
      %p141 = scmp.eq.s32.totalorder %s140, 0
      %s143 = sadd.s32 %s142, 1
      %s144 = scalar_select %p141, %s142, %s143
      %p147 = pneg %p141
      %p148 = scmp.eq.s32.totalorder %s18, 1
      %p149 = por %p147, %p148
      %p150 = scmp.ne.s32.totalorder %s142, %s145
      %p151 = scmp.eq.s32.totalorder %s18, 0
      %p152 = por %p150, %p151
      %p153 = scmp.ne.s32.totalorder %s142, %s145
      %p154 = scmp.eq.s32.totalorder %s23, 1
      %p155 = por %p153, %p154
      %p156 = scmp.ne.s32.totalorder %s145, %s146
      %p157 = scmp.eq.s32.totalorder %s23, 0
      %p158 = por %p156, %p157
      %p159 = scmp.ne.s32.totalorder %s145, %s146
      %p160 = scmp.eq.s32.totalorder %s24, 1
      %p161 = por %p159, %p160
      %p163 = scmp.ne.s32.totalorder %s146, %s162
      %p164 = scmp.eq.s32.totalorder %s24, 0
      %p165 = por %p163, %p164
      %p166 = scmp.le.s32.totalorder 1, %s18
      %p167 = scmp.lt.s32.totalorder %s18, 3
      %p168 = pnand %p166, %p167
      %p169 = pneg %p168
      // Predicated region
      $region9: #{tpu_custom_call.1} parent=5 // pred_check
        _
      $region10: #{tpu_custom_call.1} parent=5 // pred_check_branch
        %171 = sbr.rel (%p168) target = $region12
      $region11: #{tpu_custom_call.1} parent=5 // pred_region
        %s172 = ssub.s32 %s18, 1
      $region12: #{tpu_custom_call.1} parent=5 // pred_fallthru
        _
      %p173 = scmp.lt.s32.totalorder %s18, 2
      // Predicated region
      $region13: #{tpu_custom_call.1} parent=5 // pred_check
        %p174 = pneg %p173
      $region14: #{tpu_custom_call.1} parent=5 // pred_check_branch
        %176 = sbr.rel (%p174) target = $region16
      $region15: #{tpu_custom_call.1} parent=5 // pred_region
        // Predicated region
        $region17: #{tpu_custom_call.1} parent=15 // pred_check
          %p177 = pneg %p56
        $region18: #{tpu_custom_call.1} parent=15 // pred_check_branch
          %179 = sbr.rel (%p177) target = $region20
        $region19: #{tpu_custom_call.1} parent=15 // pred_region
          %s180 = sand.u32 %s46, 1
          %s181 = scalar_lea.sflag [#allocation5], %s180
          %s182 = sand.u32 %s46, 1
          %s183 = smul.addr %s182, 8
          %s184 = scalar_lea.vmem [#allocation4], %s183
          %p185 = scmp.lt.s32.totalorder %s26, 0
          %s186 = scalar_select %p185, %s26, 0
          %188 = vsyncadd %s181, 0
          %s189 = sadd.s32 %s186, %s25
          %s190 = smul.addr %s189, 8
          %s191 = scalar_lea.hbm %s0, %s190
          %s193 = sshll.u32 %s191, 4
          %s194 = int_to_ptr.hbm [resolvable:$true] %s193
          %s195 = sshll.u32 %s184, 4
          %s196 = int_to_ptr.vmem [resolvable:$true] %s195
          %198 = dma.hbm_to_vmem [thread:$0]  %s194, 128, %s196, %s181
        $region20: #{tpu_custom_call.1} parent=15 // pred_fallthru
          _
        // Predicated region
        $region21: #{tpu_custom_call.1} parent=15 // pred_check
          %p199 = pneg %p86
        $region22: #{tpu_custom_call.1} parent=15 // pred_check_branch
          %201 = sbr.rel (%p199) target = $region24
        $region23: #{tpu_custom_call.1} parent=15 // pred_region
          %s202 = sand.u32 %s18, 1
          %s203 = scalar_lea.sflag [#allocation8], %s202
          %s204 = sand.u32 %s76, 1
          %s205 = smul.addr %s204, 64
          %s206 = scalar_lea.vmem [#allocation7], %s205
          %p207 = scmp.lt.s32.totalorder %s26, 0
          %s208 = scalar_select %p207, %s26, 0
          %s209 = smul.u32 16, %s208
          %211 = vsyncadd %s203, 0
          %s212 = smul.addr %s209, 4
          %s213 = scalar_lea.hbm %s1, %s212
          %s214 = sshll.u32 %s213, 4
          %s215 = int_to_ptr.hbm [resolvable:$true] %s214
          %s216 = sshll.u32 %s206, 4
          %s217 = int_to_ptr.vmem [resolvable:$true] %s216
          %222 = dma.hbm_to_vmem [thread:$0]  %s215, 1024, %s217, %s203, 64, 64, 4
        $region24: #{tpu_custom_call.1} parent=15 // pred_fallthru
          _
        // Predicated region
        $region25: #{tpu_custom_call.1} parent=15 // pred_check
          %p223 = pneg %p118
        $region26: #{tpu_custom_call.1} parent=15 // pred_check_branch
          %225 = sbr.rel (%p223) target = $region28
        $region27: #{tpu_custom_call.1} parent=15 // pred_region
          %s226 = sand.u32 %s18, 1
          %s227 = scalar_lea.sflag [#allocation8], %s226
          %s228 = sand.u32 %s108, 1
          %s229 = smul.addr %s228, 64
          %s230 = scalar_lea.vmem [#allocation9], %s229
          %s231 = ssub.s32 %s26, 1
          %p232 = scmp.gt.s32.totalorder %s231, 0
          %s233 = scalar_select %p232, %s231, 0
          %235 = vsyncadd %s227, 0
          %s236 = smul.addr %s233, 4
          %s237 = scalar_lea.hbm %s2, %s236
          %s238 = sshll.u32 %s237, 4
          %s239 = int_to_ptr.hbm [resolvable:$true] %s238
          %s240 = sshll.u32 %s230, 4
          %s241 = int_to_ptr.vmem [resolvable:$true] %s240
          %246 = dma.hbm_to_vmem [thread:$0]  %s239, 1024, %s241, %s227, 64, 64, 4
        $region28: #{tpu_custom_call.1} parent=15 // pred_fallthru
          _
      $region16: #{tpu_custom_call.1} parent=5 // pred_fallthru
        _
      %p247 = scmp.le.s32.totalorder 1, %s18
      %p248 = scmp.lt.s32.totalorder %s18, 3
      %p249 = pnand %p247, %p248
      %p250 = pneg %p249
      // Predicated region
      $region29: #{tpu_custom_call.1} parent=5 // pred_check
        _
      $region30: #{tpu_custom_call.1} parent=5 // pred_check_branch
        %252 = sbr.rel (%p249) target = $region32
      $region31: #{tpu_custom_call.1} parent=5 // pred_region
        %s253 = ssub.s32 %s18, 1
        %s254 = sand.u32 %s49, 1
        %s255 = scalar_lea.sflag [#allocation5], %s254
        %s256 = sand.u32 %s49, 1
        %s257 = smul.addr %s256, 8
        %s258 = scalar_lea.vmem [#allocation4], %s257
        // Predicated region
        $region33: #{tpu_custom_call.1} parent=31 // pred_check
          %p259 = pneg %p62
        $region34: #{tpu_custom_call.1} parent=31 // pred_check_branch
          %261 = sbr.rel (%p259) target = $region36
        $region35: #{tpu_custom_call.1} parent=31 // pred_region
          %263 = dma.done %s255, 128
        $region36: #{tpu_custom_call.1} parent=31 // pred_fallthru
          _
        %s264 = sand.u32 %s23, 1
        %s265 = scalar_lea.sflag [#allocation8], %s264
        %s266 = sand.u32 %s79, 1
        %s267 = smul.addr %s266, 64
        %s268 = scalar_lea.vmem [#allocation7], %s267
        // Predicated region
        $region37: #{tpu_custom_call.1} parent=31 // pred_check
          %p269 = pneg %p92
        $region38: #{tpu_custom_call.1} parent=31 // pred_check_branch
          %271 = sbr.rel (%p269) target = $region40
        $region39: #{tpu_custom_call.1} parent=31 // pred_region
          %273 = dma.done %s265, 1024
        $region40: #{tpu_custom_call.1} parent=31 // pred_fallthru
          _
        %s274 = sand.u32 %s23, 1
        %s275 = scalar_lea.sflag [#allocation8], %s274
        %s276 = sand.u32 %s111, 1
        %s277 = smul.addr %s276, 64
        %s278 = scalar_lea.vmem [#allocation9], %s277
        // Predicated region
        $region41: #{tpu_custom_call.1} parent=31 // pred_check
          %p279 = pneg %p124
        $region42: #{tpu_custom_call.1} parent=31 // pred_check_branch
          %281 = sbr.rel (%p279) target = $region44
        $region43: #{tpu_custom_call.1} parent=31 // pred_region
          %283 = dma.done %s275, 1024
        $region44: #{tpu_custom_call.1} parent=31 // pred_fallthru
          _
        %s284 = sand.u32 %s49, 1
        %s285 = scalar_lea.sflag [#allocation5], %s284
        %s286 = sand.u32 %s49, 1
        %s287 = smul.addr %s286, 8
        %s288 = scalar_lea.vmem [#allocation4], %s287
        %p289 = pneg %p62
        %p290 = pneg %p59
        %s291 = sand.u32 %s23, 1
        %s292 = scalar_lea.sflag [#allocation8], %s291
        %s293 = sand.u32 %s79, 1
        %s294 = smul.addr %s293, 64
        %s295 = scalar_lea.vmem [#allocation7], %s294
        %p296 = pneg %p92
        %p297 = pneg %p89
        %s298 = sand.u32 %s23, 1
        %s299 = scalar_lea.sflag [#allocation8], %s298
        %s300 = sand.u32 %s111, 1
        %s301 = smul.addr %s300, 64
        %s302 = scalar_lea.vmem [#allocation9], %s301
        %p303 = pneg %p124
        %p304 = pneg %p121
        %p305 = pneg %p158
        %p306 = pneg %p155
        %s307 = sand.u32 %s145, 1
        %s308 = scalar_lea.sflag [#allocation6], %s307
        %s309 = sand.u32 %s145, 1
        %s310 = smul.addr %s309, 8
        %s311 = scalar_lea.vmem [#allocation10], %s310
        %p312 = scmp.lt.s32.totalorder %s28, 0
        %s313 = scalar_select %p312, %s28, 0
        %p314 = scmp.lt.s32.totalorder %s28, 0
        %s315 = scalar_select %p314, %s28, 0
        %s316 = smul.u32 16, %s315
        %s317 = ssub.s32 %s28, 1
        %p318 = scmp.gt.s32.totalorder %s317, 0
        %s319 = scalar_select %p318, %s317, 0
        %s320 = ssub.s32 %s28, 1
        %p321 = scmp.gt.s32.totalorder %s320, 0
        %s322 = scalar_select %p321, %s320, 0
        %p324 = scmp.eq.s32.totalorder %s28, 0
        // Predicated region
        $region45: #{tpu_custom_call.1} parent=31 // pred_check
          %p325 = pneg %p324
        $region46: #{tpu_custom_call.1} parent=31 // pred_check_branch
          %327 = sbr.rel (%p325) target = $region48
        $region47: #{tpu_custom_call.1} parent=31 // pred_region
          %328 = vst [vmem:[#allocation2] sm:$0xff] 0.0
        $region48: #{tpu_custom_call.1} parent=31 // pred_fallthru
          _
        %p329 = scmp.lt.s32.totalorder %s28, 1
        // Predicated region
        $region49: #{tpu_custom_call.1} parent=31 // pred_check
          %p330 = pneg %p329
        $region50: #{tpu_custom_call.1} parent=31 // pred_check_branch
          %332 = sbr.rel (%p330) target = $region52
        $region51: #{tpu_custom_call.1} parent=31 // pred_region
          %v333 = vld [vmem:[%s258] sm:$0xff]
          %v334 = vpack.c.bf16 %v333, %v333
          %s335 = smul.u32 %s28, 128
          %v336 = vlaneseq
          %v337 = vand.u32 %v336, 127
          %v338 = vstv %s335
          %v339 = vadd.s32 %v338, %v337
          %vm340 = vcmp.lt.s32.totalorder %v339, 16
          %vm341 = vmpackc.low %vm340, %vm340
          %v342 = vsel %vm341, %v334, 0
          %v343 = vld [vmem:[#allocation2] sm:$0xff]
          %v344 = vld [vmem:[%s268] sm:$0xf]
          %v345 = vld [vmem:[%s268 + $0x4] sm:$0xf]
          %v346 = vld [vmem:[%s268 + $0x8] sm:$0xf]
          %v347 = vld [vmem:[%s268 + $0xc] sm:$0xf]
          %v348 = vld [vmem:[%s268 + $0x10] sm:$0xf]
          %v349 = vld [vmem:[%s268 + $0x14] sm:$0xf]
          %v350 = vld [vmem:[%s268 + $0x18] sm:$0xf]
          %v351 = vld [vmem:[%s268 + $0x1c] sm:$0xf]
          %v352 = vld [vmem:[%s268 + $0x20] sm:$0xf]
          %v353 = vld [vmem:[%s268 + $0x24] sm:$0xf]
          %v354 = vld [vmem:[%s268 + $0x28] sm:$0xf]
          %v355 = vld [vmem:[%s268 + $0x2c] sm:$0xf]
          %v356 = vld [vmem:[%s268 + $0x30] sm:$0xf]
          %v357 = vld [vmem:[%s268 + $0x34] sm:$0xf]
          %v358 = vld [vmem:[%s268 + $0x38] sm:$0xf]
          %v359 = vld [vmem:[%s268 + $0x3c] sm:$0xf]
          %v376 = vunpack.c.l.b16 %v344
          %v377 = vunpack.c.l.b16 %v345
          %v378 = vunpack.c.l.b16 %v346
          %v379 = vunpack.c.l.b16 %v347
          %v380 = vunpack.c.l.b16 %v348
          %v381 = vunpack.c.l.b16 %v349
          %v382 = vunpack.c.l.b16 %v350
          %v383 = vunpack.c.l.b16 %v351
          %v384 = vunpack.c.l.b16 %v352
          %v385 = vunpack.c.l.b16 %v353
          %v386 = vunpack.c.l.b16 %v354
          %v387 = vunpack.c.l.b16 %v355
          %v388 = vunpack.c.l.b16 %v356
          %v389 = vunpack.c.l.b16 %v357
          %v390 = vunpack.c.l.b16 %v358
          %v391 = vunpack.c.l.b16 %v359
          %v392 = vpack.c.b16 %v377, %v376
          %v393 = vpack.c.b16 %v379, %v378
          %v394 = vpack.c.b16 %v381, %v380
          %v395 = vpack.c.b16 %v383, %v382
          %v396 = vpack.c.b16 %v385, %v384
          %v397 = vpack.c.b16 %v387, %v386
          %v398 = vpack.c.b16 %v389, %v388
          %v399 = vpack.c.b16 %v391, %v390
          %408 = vmatpush.bf16.msra.mxu0 %v399
          %409 = vmatpush.bf16.msra.mxu0 %v398
          %410 = vmatpush.bf16.msra.mxu0 %v397
          %411 = vmatpush.bf16.msra.mxu0 %v396
          %412 = vmatpush.bf16.msra.mxu0 %v395
          %413 = vmatpush.bf16.msra.mxu0 %v394
          %414 = vmatpush.bf16.msra.mxu0 %v393
          %415 = vmatpush.bf16.msra.mxu0 %v392
          %416 = vmatmul.bf16.gmra.mxu0 %v342
          %v417 = vpop.f32.mrf.mxu0
          %v418 = vadd.f32 0.0, %v417
          %v419 = vpop.f32.mrf.mxu0
          %420 = vdwg.mxu0
          %v421 = vadd.f32 %v343, %v418
          %422 = vst [vmem:[#allocation2] sm:$0xff] %v421
        $region52: #{tpu_custom_call.1} parent=31 // pred_fallthru
          _
        // Predicated region
        $region53: #{tpu_custom_call.1} parent=31 // pred_check
          %p423 = pneg %p324
        $region54: #{tpu_custom_call.1} parent=31 // pred_check_branch
          %425 = sbr.rel (%p423) target = $region56
        $region55: #{tpu_custom_call.1} parent=31 // pred_region
          %v426 = vld [vmem:[#allocation2] sm:$0xff]
          %v427 = vpack.c.bf16 %v426, %v426
          %428 = vst [vmem:[#allocation3] sm:$0xf] %v427
        $region56: #{tpu_custom_call.1} parent=31 // pred_fallthru
          _
        %p429 = scmp.ge.s32.totalorder %s28, 1
        // Predicated region
        $region57: #{tpu_custom_call.1} parent=31 // pred_check
          %p430 = pneg %p429
        $region58: #{tpu_custom_call.1} parent=31 // pred_check_branch
          %432 = sbr.rel (%p430) target = $region60
        $region59: #{tpu_custom_call.1} parent=31 // pred_region
          %v433 = vld [vmem:[#allocation3] sm:$0xf]
          %v434 = vld [vmem:[%s278] sm:$0xf]
          %v435 = vld [vmem:[%s278 + $0x4] sm:$0xf]
          %v436 = vld [vmem:[%s278 + $0x8] sm:$0xf]
          %v437 = vld [vmem:[%s278 + $0xc] sm:$0xf]
          %v438 = vld [vmem:[%s278 + $0x10] sm:$0xf]
          %v439 = vld [vmem:[%s278 + $0x14] sm:$0xf]
          %v440 = vld [vmem:[%s278 + $0x18] sm:$0xf]
          %v441 = vld [vmem:[%s278 + $0x1c] sm:$0xf]
          %v442 = vld [vmem:[%s278 + $0x20] sm:$0xf]
          %v443 = vld [vmem:[%s278 + $0x24] sm:$0xf]
          %v444 = vld [vmem:[%s278 + $0x28] sm:$0xf]
          %v445 = vld [vmem:[%s278 + $0x2c] sm:$0xf]
          %v446 = vld [vmem:[%s278 + $0x30] sm:$0xf]
          %v447 = vld [vmem:[%s278 + $0x34] sm:$0xf]
          %v448 = vld [vmem:[%s278 + $0x38] sm:$0xf]
          %v449 = vld [vmem:[%s278 + $0x3c] sm:$0xf]
          %v466 = vunpack.c.l.b16 %v434
          %v467 = vunpack.c.l.b16 %v435
          %v468 = vunpack.c.l.b16 %v436
          %v469 = vunpack.c.l.b16 %v437
          %v470 = vunpack.c.l.b16 %v438
          %v471 = vunpack.c.l.b16 %v439
          %v472 = vunpack.c.l.b16 %v440
          %v473 = vunpack.c.l.b16 %v441
          %v474 = vunpack.c.l.b16 %v442
          %v475 = vunpack.c.l.b16 %v443
          %v476 = vunpack.c.l.b16 %v444
          %v477 = vunpack.c.l.b16 %v445
          %v478 = vunpack.c.l.b16 %v446
          %v479 = vunpack.c.l.b16 %v447
          %v480 = vunpack.c.l.b16 %v448
          %v481 = vunpack.c.l.b16 %v449
          %v482 = vpack.c.b16 %v467, %v466
          %v483 = vpack.c.b16 %v469, %v468
          %v484 = vpack.c.b16 %v471, %v470
          %v485 = vpack.c.b16 %v473, %v472
          %v486 = vpack.c.b16 %v475, %v474
          %v487 = vpack.c.b16 %v477, %v476
          %v488 = vpack.c.b16 %v479, %v478
          %v489 = vpack.c.b16 %v481, %v480
          %498 = vmatpush.bf16.msra.mxu0 %v489
          %499 = vmatpush.bf16.msra.mxu0 %v488
          %500 = vmatpush.bf16.msra.mxu0 %v487
          %501 = vmatpush.bf16.msra.mxu0 %v486
          %502 = vmatpush.bf16.msra.mxu0 %v485
          %503 = vmatpush.bf16.msra.mxu0 %v484
          %504 = vmatpush.bf16.msra.mxu0 %v483
          %505 = vmatpush.bf16.msra.mxu0 %v482
          %506 = vmatmul.bf16.gmra.mxu0 %v433
          %v507 = vpop.f32.mrf.mxu0
          %v508 = vadd.f32 0.0, %v507
          %v509 = vpop.f32.mrf.mxu0
          %510 = vdwg.mxu0
          %511 = vst [vmem:[%s311] sm:$0xff] %v508
        $region60: #{tpu_custom_call.1} parent=31 // pred_fallthru
          _
        %s512 = sand.u32 %s145, 1
        %s513 = scalar_lea.sflag [#allocation6], %s512
        %s514 = sand.u32 %s145, 1
        %s515 = smul.addr %s514, 8
        %s516 = scalar_lea.vmem [#allocation10], %s515
        // Predicated region
        $region61: #{tpu_custom_call.1} parent=31 // pred_check
          %p517 = pneg %p155
        $region62: #{tpu_custom_call.1} parent=31 // pred_check_branch
          %519 = sbr.rel (%p517) target = $region64
        $region63: #{tpu_custom_call.1} parent=31 // pred_region
          %s520 = ssub.s32 %s28, 1
          %p521 = scmp.gt.s32.totalorder %s520, 0
          %s522 = scalar_select %p521, %s520, 0
          %524 = vsyncadd %s513, 0
          %s525 = sadd.s32 %s522, %s27
          %s526 = smul.addr %s525, 8
          %s527 = scalar_lea.hbm %s3, %s526
          %s529 = sshll.u32 %s516, 4
          %s530 = int_to_ptr.vmem [resolvable:$true] %s529
          %s531 = sshll.u32 %s527, 4
          %s532 = int_to_ptr.hbm [resolvable:$true] %s531
          %534 = dma.vmem_to_hbm [thread:$0]  %s530, 128, %s532, %s513
        $region64: #{tpu_custom_call.1} parent=31 // pred_fallthru
          _
      $region32: #{tpu_custom_call.1} parent=5 // pred_fallthru
        _
      %p535 = scmp.le.s32.totalorder 2, %s18
      // Predicated region
      $region65: #{tpu_custom_call.1} parent=5 // pred_check
        %p536 = pneg %p535
      $region66: #{tpu_custom_call.1} parent=5 // pred_check_branch
        %538 = sbr.rel (%p536) target = $region68
      $region67: #{tpu_custom_call.1} parent=5 // pred_region
        %s539 = ssub.s32 %s18, 2
        // Predicated region
        $region69: #{tpu_custom_call.1} parent=67 // pred_check
          %p540 = pneg %p161
        $region70: #{tpu_custom_call.1} parent=67 // pred_check_branch
          %542 = sbr.rel (%p540) target = $region72
        $region71: #{tpu_custom_call.1} parent=67 // pred_region
          %s543 = sand.u32 %s146, 1
          %s544 = scalar_lea.sflag [#allocation6], %s543
          %s545 = sand.u32 %s146, 1
          %s546 = smul.addr %s545, 8
          %s547 = scalar_lea.vmem [#allocation10], %s546
          %549 = dma.done %s544, 128
        $region72: #{tpu_custom_call.1} parent=67 // pred_fallthru
          _
      $region68: #{tpu_custom_call.1} parent=5 // pred_fallthru
        _
    $region6: #{tpu_custom_call.1} parent=1 // loop_footer
      %s22 = sadd.s32 1, %s18
    $region7: #{tpu_custom_call.1} parent=1 // loop_footer_branch
      %17 = sbr.rel target = $region3
    $region8: #{tpu_custom_call.1} parent=1 // loop_exit
      _
    %550 = vsyncpa [#allocation5], 1
    %s551 = scalar_lea.sflag [#allocation5], 1
    %552 = vsyncpa %s551, 1
    %553 = vsyncpa [#allocation8], 1
    %s554 = scalar_lea.sflag [#allocation8], 1
    %555 = vsyncpa %s554, 1
    %556 = vsyncpa [#allocation6], 1
    %s557 = scalar_lea.sflag [#allocation6], 1
    %558 = vsyncpa %s557, 1

</llo_original>
